<compile_context>
chip_gen: v6e
topology: v6e:2x2x1
jax: 0.10.0
libtpu: 0.0.40
codegen_flags: <defaults>
</compile_context>

<pallas_src>
import functools

import jax
import jax.numpy as jnp
from jax.experimental import pallas as pl
from jax.experimental.pallas import tpu as pltpu


def critic_kernel(x_ref, w1_ref, b1_ref, w2_ref, b2_ref, w3_ref, b3_ref, o_ref):
    # Cast of x to the matmul dtype happens here (in-kernel VPU cast, hidden
    # under the x DMA) rather than as a separate XLA pass in the wrapper.
    x = x_ref[...].astype(w1_ref.dtype)
    # fc1 (MXU, f32 accumulation) + bias + ReLU in f32.
    h1 = jnp.dot(x, w1_ref[...], preferred_element_type=jnp.float32)
    h1 = jnp.maximum(h1 + b1_ref[...], 0.0)
    # fc2 (MXU, f32 accumulation) + bias + ReLU in f32.
    h2 = jnp.dot(h1.astype(w2_ref.dtype), w2_ref[...],
                 preferred_element_type=jnp.float32)
    h2 = jnp.maximum(h2 + b2_ref[...], 0.0)
    # fc3: N=1 head -> VPU multiply + lane reduction instead of a 1-column MXU
    # matmul. w3_ref is a (1, 64) row vector, b3_ref is (1, 1).
    v = jnp.sum(h2 * w3_ref[...], axis=-1, keepdims=True) + b3_ref[...]  # (TB, 1)
    o_ref[...] = v.astype(o_ref.dtype)


def _round_up(v, m):
    return ((v + m - 1) // m) * m


def _xla_forward(x, p, compute_dtype):
    cdt = compute_dtype
    h1 = jnp.dot(x.astype(cdt), p["w1"].astype(cdt),
                 preferred_element_type=jnp.float32) + p["b1"]
    h1 = jnp.maximum(h1, 0.0)
    h2 = jnp.dot(h1.astype(cdt), p["w2"].astype(cdt),
                 preferred_element_type=jnp.float32) + p["b2"]
    h2 = jnp.maximum(h2, 0.0)
    return jnp.dot(h2, p["w3"].reshape(-1, 1)) + p["b3"].reshape(1, 1)


def critic_forward(x, params, *, block_b=2048, compute_dtype=jnp.float32,
                   min_pallas_batch=256):
    """x: (B, state_size) float32. params: dict of w1,b1,w2,b2,w3,b3.

    compute_dtype: dtype fed to the two MXU matmuls (f32 or bf16); accumulation
    and all elementwise math stay in f32, so bf16 is valid on v5e as well.
    min_pallas_batch: below this batch size use the plain XLA dot chain
    (the custom-call launch dominates at tiny B).
    """
    B, S = x.shape
    if B < min_pallas_batch:
        return _xla_forward(x, params, compute_dtype)

    cdt = compute_dtype
    # Weight/bias casts are tiny one-time ops (hoisted by jit); x is NOT cast
    # here -- the kernel casts it per-tile.
    w1 = params["w1"].astype(cdt)
    w2 = params["w2"].astype(cdt)
    b1 = params["b1"].reshape(1, -1).astype(jnp.float32)
    b2 = params["b2"].reshape(1, -1).astype(jnp.float32)
    w3 = params["w3"].reshape(1, -1).astype(jnp.float32)   # (1, 64) row for VPU head
    b3 = params["b3"].reshape(1, 1).astype(jnp.float32)
    H1, H2 = w1.shape[1], w2.shape[1]

    # Batch tile: multiple of 8 (sublane), capped by block_b, and also capped
    # at ~B/2 so there are >= 2 grid steps for v7x's two TensorCores.
    half = _round_up(pl.cdiv(B, 2), 8)
    TB = max(8, min(block_b, half))
    nb = pl.cdiv(B, TB)

    def nbytes(a):
        return a.size * a.dtype.itemsize

    cost = pl.CostEstimate(
        flops=2 * B * (S * H1 + H1 * H2 + H2),
        transcendentals=0,
        bytes_accessed=(nbytes(x) + nbytes(w1) + nbytes(b1) + nbytes(w2)
                        + nbytes(b2) + nbytes(w3) + nbytes(b3) + B * 4),
    )

    # VMEM budget (explicit so v7x's 64 MiB / 32 MiB scoped default is safe):
    # double-buffered x + out tiles, weights, and f32 temps (h1, h2), 2x headroom.
    est = (2 * TB * S * x.dtype.itemsize           # x double buffer
           + 2 * TB * 128 * 4                      # out tile (padded to 128 lanes)
           + TB * (H1 + H2) * 4                    # h1 / h2 temps
           + nbytes(w1) + nbytes(w2) + (1 << 20))  # weights + slack
    vmem_limit = min(64 << 20, max(16 << 20, 2 * est))

    def resident(a):
        # Weights/biases: same block every grid step -> stay VMEM-resident.
        return pl.BlockSpec(a.shape, lambda i: (0,) * a.ndim)

    out = pl.pallas_call(
        critic_kernel,
        out_shape=jax.ShapeDtypeStruct((B, 1), jnp.float32),
        grid=(nb,),
        in_specs=[
            pl.BlockSpec((TB, S), lambda i: (i, 0)),     # x: tiled over batch
            resident(w1), resident(b1),
            resident(w2), resident(b2),
            resident(w3), resident(b3),
        ],
        out_specs=pl.BlockSpec((TB, 1), lambda i: (i, 0)),
        compiler_params=pltpu.CompilerParams(
            dimension_semantics=("parallel",),
            vmem_limit_bytes=int(vmem_limit)),
        cost_estimate=cost,
    )(x, w1, b1, w2, b2, w3, b3)
    return out


def init_params(key, state_size):
    """Deterministic init mimicking PyTorch nn.Linear defaults
    (uniform +/- 1/sqrt(fan_in)); weights stored transposed as (in, out)."""
    def linear(k, fan_in, fan_out):
        kw, kb = jax.random.split(k)
        bound = 1.0 / jnp.sqrt(fan_in)
        w = jax.random.uniform(kw, (fan_in, fan_out), jnp.float32, -bound, bound)
        b = jax.random.uniform(kb, (1, fan_out), jnp.float32, -bound, bound)
        return w, b

    k1, k2, k3 = jax.random.split(key, 3)
    w1, b1 = linear(k1, state_size, 128)
    w2, b2 = linear(k2, 128, 64)
    w3, b3 = linear(k3, 64, 1)
    return {"w1": w1, "b1": b1, "w2": w2, "b2": b2, "w3": w3, "b3": b3}


def critic_reference(x, p, compute_dtype=jnp.float32):
    return _xla_forward(x, p, compute_dtype)


if __name__ == "__main__":
    key = jax.random.PRNGKey(0)
    kx, kp, kx2 = jax.random.split(key, 3)

    state_size = 32
    params = init_params(kp, state_size)

    fwd = jax.jit(critic_forward,
                  static_argnames=("block_b", "compute_dtype", "min_pallas_batch"))

    # 1) Small batch, Pallas path forced (single grid step), f32.
    x_small = jax.random.normal(kx, (8, state_size), jnp.float32)
    out = jax.block_until_ready(fwd(x_small, params, min_pallas_batch=0))
    ref = critic_reference(x_small, params)
    assert out.shape == (8, 1), out.shape
    assert jnp.allclose(out, ref, atol=1e-5, rtol=1e-5), (
        f"f32 small-batch max abs diff {jnp.max(jnp.abs(out - ref))}")

    # 2) Larger batch exercising the batch grid (>= 2 tiles for v7x), f32.
    B = 1024
    x_big = jax.random.normal(kx2, (B, state_size), jnp.float32)
    out_big = jax.block_until_ready(fwd(x_big, params))
    ref_big = critic_reference(x_big, params)
    assert out_big.shape == (B, 1), out_big.shape
    assert jnp.allclose(out_big, ref_big, atol=1e-4, rtol=1e-4), (
        f"f32 big-batch max abs diff {jnp.max(jnp.abs(out_big - ref_big))}")

    # 3) bf16 MXU fast path (valid on all generations; elementwise stays f32).
    out_bf = jax.block_until_ready(
        fwd(x_big, params, compute_dtype=jnp.bfloat16))
    ref_bf = critic_reference(x_big, params, compute_dtype=jnp.bfloat16)
    assert jnp.allclose(out_bf, ref_bf, atol=1e-2, rtol=1e-2), (
        f"bf16 max abs diff {jnp.max(jnp.abs(out_bf - ref_bf))}")

    # 4) Tiny-batch dispatch (default threshold) takes the plain XLA path.
    out_tiny = jax.block_until_ready(fwd(x_small, params))
    assert jnp.allclose(out_tiny, ref, atol=1e-5, rtol=1e-5)

    print("KERNEL_OK")
</pallas_src>

<mosaic_0001>
module attributes {stable_mosaic.version = 11 : i64} {
  func.func @critic_kernel(%arg0: i32, %arg1: memref<8x32xf32, #tpu.memory_space<vmem>>, %arg2: memref<32x128xf32, #tpu.memory_space<vmem>>, %arg3: memref<1x128xf32, #tpu.memory_space<vmem>>, %arg4: memref<128x64xf32, #tpu.memory_space<vmem>>, %arg5: memref<1x64xf32, #tpu.memory_space<vmem>>, %arg6: memref<1x64xf32, #tpu.memory_space<vmem>>, %arg7: memref<1x1xf32, #tpu.memory_space<vmem>>, %arg8: memref<8x1xf32, #tpu.memory_space<vmem>>) attributes {dimension_semantics = [#tpu.dimension_semantics<parallel>], iteration_bounds = array<i64: 1>, scalar_prefetch = 0 : i64, scratch_operands = 0 : i64, tpu.core_type = #tpu.core_type<tc>, window_params = [{transform_indices = @transform_0, window_bounds = array<i64: 8, 32>}, {pipeline_mode = #tpu.pipeline_mode<synchronous>, transform_indices = @transform_1, window_bounds = array<i64: 32, 128>}, {pipeline_mode = #tpu.pipeline_mode<synchronous>, transform_indices = @transform_2, window_bounds = array<i64: 1, 128>}, {pipeline_mode = #tpu.pipeline_mode<synchronous>, transform_indices = @transform_3, window_bounds = array<i64: 128, 64>}, {pipeline_mode = #tpu.pipeline_mode<synchronous>, transform_indices = @transform_4, window_bounds = array<i64: 1, 64>}, {pipeline_mode = #tpu.pipeline_mode<synchronous>, transform_indices = @transform_5, window_bounds = array<i64: 1, 64>}, {pipeline_mode = #tpu.pipeline_mode<synchronous>, transform_indices = @transform_6, window_bounds = array<i64: 1, 1>}, {transform_indices = @transform_7, window_bounds = array<i64: 8, 1>}]} {
    %c0 = arith.constant 0 : index
    %c0_0 = arith.constant 0 : index
    %0 = vector.load %arg1[%c0, %c0_0] : memref<8x32xf32, #tpu.memory_space<vmem>>, vector<8x32xf32>
    %c0_1 = arith.constant 0 : index
    %c0_2 = arith.constant 0 : index
    %1 = vector.load %arg2[%c0_1, %c0_2] : memref<32x128xf32, #tpu.memory_space<vmem>>, vector<32x128xf32>
    %cst = arith.constant dense<0.000000e+00> : vector<8x128xf32>
    %2 = tpu.matmul %0, %1, %cst {dimension_numbers = #tpu.dot_dimension_numbers<[1], [0], [0], [1], [0, 0, 1, 1], [], []>} : vector<8x32xf32>, vector<32x128xf32>, vector<8x128xf32> -> vector<8x128xf32>
    %c0_3 = arith.constant 0 : index
    %c0_4 = arith.constant 0 : index
    %3 = vector.load %arg3[%c0_3, %c0_4] : memref<1x128xf32, #tpu.memory_space<vmem>>, vector<1x128xf32>
    %4 = vector.broadcast %3 : vector<1x128xf32> to vector<8x128xf32>
    %5 = arith.addf %2, %4 : vector<8x128xf32>
    %cst_5 = arith.constant 0.000000e+00 : f32
    %6 = vector.broadcast %cst_5 : f32 to vector<8x128xf32>
    %7 = arith.maximumf %5, %6 : vector<8x128xf32>
    %c0_6 = arith.constant 0 : index
    %c0_7 = arith.constant 0 : index
    %8 = vector.load %arg4[%c0_6, %c0_7] : memref<128x64xf32, #tpu.memory_space<vmem>>, vector<128x64xf32>
    %cst_8 = arith.constant dense<0.000000e+00> : vector<8x64xf32>
    %9 = tpu.matmul %7, %8, %cst_8 {dimension_numbers = #tpu.dot_dimension_numbers<[1], [0], [0], [1], [0, 0, 1, 1], [], []>} : vector<8x128xf32>, vector<128x64xf32>, vector<8x64xf32> -> vector<8x64xf32>
    %c0_9 = arith.constant 0 : index
    %c0_10 = arith.constant 0 : index
    %10 = vector.load %arg5[%c0_9, %c0_10] : memref<1x64xf32, #tpu.memory_space<vmem>>, vector<1x64xf32>
    %11 = vector.broadcast %10 : vector<1x64xf32> to vector<8x64xf32>
    %12 = arith.addf %9, %11 : vector<8x64xf32>
    %cst_11 = arith.constant 0.000000e+00 : f32
    %13 = vector.broadcast %cst_11 : f32 to vector<8x64xf32>
    %14 = arith.maximumf %12, %13 : vector<8x64xf32>
    %c0_12 = arith.constant 0 : index
    %c0_13 = arith.constant 0 : index
    %15 = vector.load %arg6[%c0_12, %c0_13] : memref<1x64xf32, #tpu.memory_space<vmem>>, vector<1x64xf32>
    %16 = vector.broadcast %15 : vector<1x64xf32> to vector<8x64xf32>
    %17 = arith.mulf %14, %16 : vector<8x64xf32>
    %cst_14 = arith.constant dense<0.000000e+00> : vector<8xf32>
    %18 = vector.multi_reduction <add>, %17, %cst_14 [1] : vector<8x64xf32> to vector<8xf32>
    %19 = vector.shape_cast %18 : vector<8xf32> to vector<8x1xf32>
    %c0_15 = arith.constant 0 : index
    %c0_16 = arith.constant 0 : index
    %20 = vector.load %arg7[%c0_15, %c0_16] : memref<1x1xf32, #tpu.memory_space<vmem>>, vector<1x1xf32>
    %21 = vector.broadcast %20 : vector<1x1xf32> to vector<8x1xf32>
    %22 = arith.addf %19, %21 : vector<8x1xf32>
    %c0_17 = arith.constant 0 : index
    %c0_18 = arith.constant 0 : index
    %23 = vector.load %arg8[%c0_17, %c0_18] : memref<8x1xf32, #tpu.memory_space<vmem>>, vector<8x1xf32>
    tpu.vector_store %arg8[%c0_17, %c0_18], %22 {strides = array<i32>} : memref<8x1xf32, #tpu.memory_space<vmem>>, vector<8x1xf32>,
    return
  }
  func.func @transform_0(%arg0: i32) -> (i32, i32) {
    %c0_i32 = arith.constant 0 : i32
    %c0_i32_0 = arith.constant 0 : i32
    return %arg0, %c0_i32 : i32, i32
  }
  func.func @transform_1(%arg0: i32) -> (i32, i32) {
    %c0_i32 = arith.constant 0 : i32
    %c0_i32_0 = arith.constant 0 : i32
    %c0_i32_1 = arith.constant 0 : i32
    return %c0_i32, %c0_i32_0 : i32, i32
  }
  func.func @transform_2(%arg0: i32) -> (i32, i32) {
    %c0_i32 = arith.constant 0 : i32
    %c0_i32_0 = arith.constant 0 : i32
    %c0_i32_1 = arith.constant 0 : i32
    return %c0_i32, %c0_i32_0 : i32, i32
  }
  func.func @transform_3(%arg0: i32) -> (i32, i32) {
    %c0_i32 = arith.constant 0 : i32
    %c0_i32_0 = arith.constant 0 : i32
    %c0_i32_1 = arith.constant 0 : i32
    return %c0_i32, %c0_i32_0 : i32, i32
  }
  func.func @transform_4(%arg0: i32) -> (i32, i32) {
    %c0_i32 = arith.constant 0 : i32
    %c0_i32_0 = arith.constant 0 : i32
    %c0_i32_1 = arith.constant 0 : i32
    return %c0_i32, %c0_i32_0 : i32, i32
  }
  func.func @transform_5(%arg0: i32) -> (i32, i32) {
    %c0_i32 = arith.constant 0 : i32
    %c0_i32_0 = arith.constant 0 : i32
    %c0_i32_1 = arith.constant 0 : i32
    return %c0_i32, %c0_i32_0 : i32, i32
  }
  func.func @transform_6(%arg0: i32) -> (i32, i32) {
    %c0_i32 = arith.constant 0 : i32
    %c0_i32_0 = arith.constant 0 : i32
    %c0_i32_1 = arith.constant 0 : i32
    return %c0_i32, %c0_i32_0 : i32, i32
  }
  func.func @transform_7(%arg0: i32) -> (i32, i32) {
    %c0_i32 = arith.constant 0 : i32
    %c0_i32_0 = arith.constant 0 : i32
    return %arg0, %c0_i32 : i32, i32
  }
}

</mosaic_0001>

<llo_original>
// kernel: critic_forward.1
$region0: #{critic_forward.1}
  #allocation0 [shape = 'u32[]', space=smem, size = 0x4, offset = 0x4, fixed_abs, tag = 'smem constant byte address 0x4 - core index']
  #allocation1 [shape = 'u32[144,128]{1,0:T(1,128)}', space=vmem, size = 0x12000, scoped, tag = 'internal scratch']
  #allocation2 [shape = 'f32[1,1]{1,0:T(1,128)S(1)}', space=vmem, size = 0x200, scoped, tag = 'scoped memory for critic_forward.1']
  %s0 = inlined_call_operand.vmem [shape: f32[8,32], index: 0, kind: input, shape index: {}]
  %s1 = inlined_call_operand.vmem [shape: f32[32,128], index: 1, kind: input, shape index: {}]
  %s2 = inlined_call_operand.vmem [shape: f32[1,128], index: 2, kind: input, shape index: {}]
  %s3 = inlined_call_operand.vmem [shape: f32[128,64], index: 3, kind: input, shape index: {}]
  %s4 = inlined_call_operand.vmem [shape: f32[1,64], index: 4, kind: input, shape index: {}]
  %s5 = inlined_call_operand.vmem [shape: f32[1,64], index: 5, kind: input, shape index: {}]
  %s6 = inlined_call_operand.<no memory space> [shape: f32[1,1], index: 6, kind: input, shape index: {}]
  %s7 = inlined_call_operand.vmem [shape: f32[8,1], index: 7, kind: output, shape index: {}]
  %s8 = sld [smem:[#allocation0]]
  $region38: #{critic_forward.1} parent=0
    _
  %s10 = ssub.s32 1, %s8
  %s11 = scalar_select 0, %s10, %s8
  %v12 = vstv %s6
  %13 = vst [vmem:[#allocation2] sm:$0x1] %v12
  // Predicated region
  $region2: #{critic_forward.1} parent=0 // pred_check
    _
  $region3: #{critic_forward.1} parent=0 // pred_check_branch
    %15 = sbr.rel (0) target = $region5
  $region4: #{critic_forward.1} parent=0 // pred_region
    _
  $region5: #{critic_forward.1} parent=0 // pred_fallthru
    _
  // Predicated region
  $region6: #{critic_forward.1} parent=0 // pred_check
    _
  $region7: #{critic_forward.1} parent=0 // pred_check_branch
    %17 = sbr.rel (0) target = $region9
  $region8: #{critic_forward.1} parent=0 // pred_region
    _
  $region9: #{critic_forward.1} parent=0 // pred_fallthru
    _
  // Predicated region
  $region10: #{critic_forward.1} parent=0 // pred_check
    _
  $region11: #{critic_forward.1} parent=0 // pred_check_branch
    %19 = sbr.rel (0) target = $region13
  $region12: #{critic_forward.1} parent=0 // pred_region
    _
  $region13: #{critic_forward.1} parent=0 // pred_fallthru
    _
  // Predicated region
  $region14: #{critic_forward.1} parent=0 // pred_check
    _
  $region15: #{critic_forward.1} parent=0 // pred_check_branch
    %21 = sbr.rel (0) target = $region17
  $region16: #{critic_forward.1} parent=0 // pred_region
    _
  $region17: #{critic_forward.1} parent=0 // pred_fallthru
    _
  // Predicated region
  $region18: #{critic_forward.1} parent=0 // pred_check
    _
  $region19: #{critic_forward.1} parent=0 // pred_check_branch
    %23 = sbr.rel (0) target = $region21
  $region20: #{critic_forward.1} parent=0 // pred_region
    _
  $region21: #{critic_forward.1} parent=0 // pred_fallthru
    _
  // Predicated region
  $region22: #{critic_forward.1} parent=0 // pred_check
    _
  $region23: #{critic_forward.1} parent=0 // pred_check_branch
    %25 = sbr.rel (0) target = $region25
  $region24: #{critic_forward.1} parent=0 // pred_region
    _
  $region25: #{critic_forward.1} parent=0 // pred_fallthru
    _
  // Predicated region
  $region26: #{critic_forward.1} parent=0 // pred_check
    _
  $region27: #{critic_forward.1} parent=0 // pred_check_branch
    %27 = sbr.rel (0) target = $region29
  $region28: #{critic_forward.1} parent=0 // pred_region
    _
  $region29: #{critic_forward.1} parent=0 // pred_fallthru
    _
  %v28 = vld [vmem:[%s0] sm:$0xff]
  %v29 = vld [vmem:[%s1] sm:$0xff]
  %v30 = vld [vmem:[%s1 + $0x8] sm:$0xff]
  %v31 = vld [vmem:[%s1 + $0x10] sm:$0xff]
  %v32 = vld [vmem:[%s1 + $0x18] sm:$0xff]
  %v33 = vld [vmem:[%s2] sm:$0x1]
  %v35 = vlaneseq
  %v36 = vshrl.u32 %v35, 7
  %v37 = vsub.s32 0, %v36
  %v38 = vrot.slane %v33, %v37
  %vm40 = vcmask 261120
  %v42 = vsel %vm40, %v28, 0
  %44 = vmatprep.subr.mxu0 0.0
  %45 = vmatpush1.msra.mxu0 0.0
  %46 = vmatprep.subr.mxu0 0.0
  %47 = vmatpush1.msra.mxu0 0.0
  %48 = vmatprep.subr.mxu0 0.0
  %49 = vmatpush1.msra.mxu0 0.0
  %50 = vmatprep.subr.mxu0 0.0
  %51 = vmatpush1.msra.mxu0 0.0
  %52 = vmatprep.subr.mxu0 0.0
  %53 = vmatpush1.msra.mxu0 0.0
  %54 = vmatprep.subr.mxu0 0.0
  %55 = vmatpush1.msra.mxu0 0.0
  %56 = vmatprep.subr.mxu0 0.0
  %57 = vmatpush1.msra.mxu0 0.0
  %58 = vmatprep.subr.mxu0 0.0
  %59 = vmatpush1.msra.mxu0 0.0
  %60 = vmatprep.subr.mxu0 0.0
  %61 = vmatpush1.msra.mxu0 0.0
  %62 = vmatprep.subr.mxu0 0.0
  %63 = vmatpush1.msra.mxu0 0.0
  %64 = vmatprep.subr.mxu0 0.0
  %65 = vmatpush1.msra.mxu0 0.0
  %66 = vmatprep.subr.mxu0 0.0
  %67 = vmatpush1.msra.mxu0 0.0
  %68 = vmatprep.subr.mxu0 0.0
  %69 = vmatpush1.msra.mxu0 %v32
  %70 = vmatprep.subr.mxu0 0.0
  %71 = vmatpush1.msra.mxu0 %v31
  %72 = vmatprep.subr.mxu0 0.0
  %73 = vmatpush1.msra.mxu0 %v30
  %74 = vmatprep.subr.mxu0 0.0
  %75 = vmatpush1.msra.mxu0 %v29
  %76 = vmatprep.subr.mxu0 0.0
  %77 = vmatpush2.msra.mxu0 0.0
  %78 = vmatprep.subr.mxu0 0.0
  %79 = vmatpush2.msra.mxu0 0.0
  %80 = vmatprep.subr.mxu0 0.0
  %81 = vmatpush2.msra.mxu0 0.0
  %82 = vmatprep.subr.mxu0 0.0
  %83 = vmatpush2.msra.mxu0 0.0
  %84 = vmatprep.subr.mxu0 0.0
  %85 = vmatpush2.msra.mxu0 0.0
  %86 = vmatprep.subr.mxu0 0.0
  %87 = vmatpush2.msra.mxu0 0.0
  %88 = vmatprep.subr.mxu0 0.0
  %89 = vmatpush2.msra.mxu0 0.0
  %90 = vmatprep.subr.mxu0 0.0
  %91 = vmatpush2.msra.mxu0 0.0
  %92 = vmatprep.subr.mxu0 0.0
  %93 = vmatpush2.msra.mxu0 0.0
  %94 = vmatprep.subr.mxu0 0.0
  %95 = vmatpush2.msra.mxu0 0.0
  %96 = vmatprep.subr.mxu0 0.0
  %97 = vmatpush2.msra.mxu0 0.0
  %98 = vmatprep.subr.mxu0 0.0
  %99 = vmatpush2.msra.mxu0 0.0
  %100 = vmatprep.subr.mxu0 0.0
  %101 = vmatpush2.msra.mxu0 0.0
  %102 = vmatprep.subr.mxu0 0.0
  %103 = vmatpush2.msra.mxu0 0.0
  %104 = vmatprep.subr.mxu0 0.0
  %105 = vmatpush2.msra.mxu0 0.0
  %106 = vmatprep.subr.mxu0 0.0
  %107 = vmatpush2.msra.mxu0 0.0
  %108 = vmatprep.mubr.f32.mxu0 0.0
  %109 = vmatmul.mubr.f32.gmra.mxu0 %v42
  %v110 = vpop.f32.mrf.mxu0
  %v111 = vadd.f32 %v38, %v110
  %v112 = vpop.f32.mrf.mxu0
  %113 = vdwg.mxu0
  %v114 = vmax.f32 %v111, 0.0
  %v115 = vld [vmem:[%s3] sm:$0xff]
  %v116 = vld [vmem:[%s3 + $0x8] sm:$0xff]
  %v117 = vld [vmem:[%s3 + $0x10] sm:$0xff]
  %v118 = vld [vmem:[%s3 + $0x18] sm:$0xff]
  %v119 = vld [vmem:[%s3 + $0x20] sm:$0xff]
  %v120 = vld [vmem:[%s3 + $0x28] sm:$0xff]
  %v121 = vld [vmem:[%s3 + $0x30] sm:$0xff]
  %v122 = vld [vmem:[%s3 + $0x38] sm:$0xff]
  %v123 = vld [vmem:[%s3 + $0x40] sm:$0xff]
  %v124 = vld [vmem:[%s3 + $0x48] sm:$0xff]
  %v125 = vld [vmem:[%s3 + $0x50] sm:$0xff]
  %v126 = vld [vmem:[%s3 + $0x58] sm:$0xff]
  %v127 = vld [vmem:[%s3 + $0x60] sm:$0xff]
  %v128 = vld [vmem:[%s3 + $0x68] sm:$0xff]
  %v129 = vld [vmem:[%s3 + $0x70] sm:$0xff]
  %v130 = vld [vmem:[%s3 + $0x78] sm:$0xff]
  %v131 = vld [vmem:[%s4] sm:$0x1]
  %v133 = vlaneseq
  %v134 = vshrl.u32 %v133, 7
  %v135 = vsub.s32 0, %v134
  %v136 = vrot.slane %v131, %v135
  %138 = vmatprep.subr.mxu0 0.0
  %139 = vmatpush1.msra.mxu0 %v130
  %140 = vmatprep.subr.mxu0 0.0
  %141 = vmatpush1.msra.mxu0 %v129
  %142 = vmatprep.subr.mxu0 0.0
  %143 = vmatpush1.msra.mxu0 %v128
  %144 = vmatprep.subr.mxu0 0.0
  %145 = vmatpush1.msra.mxu0 %v127
  %146 = vmatprep.subr.mxu0 0.0
  %147 = vmatpush1.msra.mxu0 %v126
  %148 = vmatprep.subr.mxu0 0.0
  %149 = vmatpush1.msra.mxu0 %v125
  %150 = vmatprep.subr.mxu0 0.0
  %151 = vmatpush1.msra.mxu0 %v124
  %152 = vmatprep.subr.mxu0 0.0
  %153 = vmatpush1.msra.mxu0 %v123
  %154 = vmatprep.subr.mxu0 0.0
  %155 = vmatpush1.msra.mxu0 %v122
  %156 = vmatprep.subr.mxu0 0.0
  %157 = vmatpush1.msra.mxu0 %v121
  %158 = vmatprep.subr.mxu0 0.0
  %159 = vmatpush1.msra.mxu0 %v120
  %160 = vmatprep.subr.mxu0 0.0
  %161 = vmatpush1.msra.mxu0 %v119
  %162 = vmatprep.subr.mxu0 0.0
  %163 = vmatpush1.msra.mxu0 %v118
  %164 = vmatprep.subr.mxu0 0.0
  %165 = vmatpush1.msra.mxu0 %v117
  %166 = vmatprep.subr.mxu0 0.0
  %167 = vmatpush1.msra.mxu0 %v116
  %168 = vmatprep.subr.mxu0 0.0
  %169 = vmatpush1.msra.mxu0 %v115
  %170 = vmatprep.subr.mxu0 0.0
  %171 = vmatpush2.msra.mxu0 0.0
  %172 = vmatprep.subr.mxu0 0.0
  %173 = vmatpush2.msra.mxu0 0.0
  %174 = vmatprep.subr.mxu0 0.0
  %175 = vmatpush2.msra.mxu0 0.0
  %176 = vmatprep.subr.mxu0 0.0
  %177 = vmatpush2.msra.mxu0 0.0
  %178 = vmatprep.subr.mxu0 0.0
  %179 = vmatpush2.msra.mxu0 0.0
  %180 = vmatprep.subr.mxu0 0.0
  %181 = vmatpush2.msra.mxu0 0.0
  %182 = vmatprep.subr.mxu0 0.0
  %183 = vmatpush2.msra.mxu0 0.0
  %184 = vmatprep.subr.mxu0 0.0
  %185 = vmatpush2.msra.mxu0 0.0
  %186 = vmatprep.subr.mxu0 0.0
  %187 = vmatpush2.msra.mxu0 0.0
  %188 = vmatprep.subr.mxu0 0.0
  %189 = vmatpush2.msra.mxu0 0.0
  %190 = vmatprep.subr.mxu0 0.0
  %191 = vmatpush2.msra.mxu0 0.0
  %192 = vmatprep.subr.mxu0 0.0
  %193 = vmatpush2.msra.mxu0 0.0
  %194 = vmatprep.subr.mxu0 0.0
  %195 = vmatpush2.msra.mxu0 0.0
  %196 = vmatprep.subr.mxu0 0.0
  %197 = vmatpush2.msra.mxu0 0.0
  %198 = vmatprep.subr.mxu0 0.0
  %199 = vmatpush2.msra.mxu0 0.0
  %200 = vmatprep.subr.mxu0 0.0
  %201 = vmatpush2.msra.mxu0 0.0
  %202 = vmatprep.mubr.f32.mxu0 0.0
  %203 = vmatmul.mubr.f32.gmra.mxu0 %v114
  %v204 = vpop.f32.mrf.mxu0
  %v205 = vadd.f32 %v136, %v204
  %v206 = vpop.f32.mrf.mxu0
  %207 = vdwg.mxu0
  %v208 = vmax.f32 %v205, 0.0
  %v209 = vld [vmem:[%s5] sm:$0x1]
  %v211 = vlaneseq
  %v212 = vshrl.u32 %v211, 7
  %v213 = vsub.s32 0, %v212
  %v214 = vrot.slane %v209, %v213
  %v216 = vmul.f32 %v208, %v214
  %vm217 = vcmask 523264
  %v218 = vsel %vm217, %v216, 0.0
  %219 = vadd.xlane.f32.xlu0 %v218
  %v220 = vpop.xlane.xlu0 %219
  %v221 = vld [vmem:[#allocation2] sm:$0x1]
  %v223 = vlaneseq
  %v224 = vshrl.u32 %v223, 7
  %v225 = vsub.s32 0, %v224
  %v226 = vrot.slane %v221, %v225
  %v228 = vadd.f32 %v220, %v226
  %vm229 = vcmask 7168
  %230 = vst.msk [vmem:[%s7] sm:$0xff] %vm229, %v228
  // Predicated region
  $region30: #{critic_forward.1} parent=0 // pred_check
    _
  $region31: #{critic_forward.1} parent=0 // pred_check_branch
    %232 = sbr.rel (0) target = $region33
  $region32: #{critic_forward.1} parent=0 // pred_region
    _
  $region33: #{critic_forward.1} parent=0 // pred_fallthru
    _
  // Predicated region
  $region34: #{critic_forward.1} parent=0 // pred_check
    _
  $region35: #{critic_forward.1} parent=0 // pred_check_branch
    %234 = sbr.rel (0) target = $region37
  $region36: #{critic_forward.1} parent=0 // pred_region
    _
  $region37: #{critic_forward.1} parent=0 // pred_fallthru
    _

</llo_original>
